<compile_context>
chip_gen: v7x
topology: tpu7x:2x2x1
jax: 0.10.0
libtpu: 0.0.40
codegen_flags: <defaults>
</compile_context>

<pallas_src>
import functools

import jax
import jax.numpy as jnp
from jax.experimental import pallas as pl
from jax.experimental.pallas import tpu as pltpu

LANE = 128  # TPU lane width; final-layer output is padded to this.


def _round_up(n, m):
    return ((n + m - 1) // m) * m


def dqn_kernel(x_ref, w1_ref, b1_ref, w2_ref, b2_ref, w3_ref, b3_ref,
               wo_ref, bo_ref, q_ref):
    # fc1 + ReLU
    h = jnp.dot(x_ref[...], w1_ref[...], preferred_element_type=jnp.float32)
    h = jnp.maximum(h + b1_ref[...], 0.0)
    # fc2 + ReLU
    h = jnp.dot(h, w2_ref[...], preferred_element_type=jnp.float32)
    h = jnp.maximum(h + b2_ref[...], 0.0)
    # fc3 + ReLU
    h = jnp.dot(h, w3_ref[...], preferred_element_type=jnp.float32)
    h = jnp.maximum(h + b3_ref[...], 0.0)
    # out (no activation), lane-padded to 128 columns
    q = jnp.dot(h, wo_ref[...], preferred_element_type=jnp.float32) + bo_ref[...]
    q_ref[...] = q.astype(q_ref.dtype)


@functools.partial(jax.jit, static_argnames=("tb",))
def dqn_forward(x, params, *, tb=256):
    """x: (B, input_size) f32. params: dict of pre-transposed weights/biases."""
    B, in_size = x.shape
    h1 = params["w1"].shape[1]
    h2 = params["w2"].shape[1]
    h3 = params["w3"].shape[1]
    out_size = params["wo"].shape[1]

    # Batch tile: multiple of 8 (f32 sublane), capped at `tb` rows per step.
    TB = min(_round_up(tb, 8), _round_up(B, 8))
    Bp = _round_up(B, TB)
    if Bp != B:
        x = jnp.pad(x, ((0, Bp - B), (0, 0)))

    # Lane-dense final layer: pad wo/bo out to 128 columns (zeros -> padded
    # Q columns are exactly the bias-less/weight-less zeros, sliced off below).
    wo_p = jnp.pad(params["wo"], ((0, 0), (0, LANE - out_size)))
    bo_p = jnp.pad(params["bo"], ((0, 0), (0, LANE - out_size)))

    args = (x,
            params["w1"], params["b1"],
            params["w2"], params["b2"],
            params["w3"], params["b3"],
            wo_p, bo_p)

    def tiled(shape):            # batch-tiled operand
        return pl.BlockSpec(shape, lambda i: (i, 0))

    def resident(shape):         # VMEM-resident across all grid steps
        return pl.BlockSpec(shape, lambda i: (0, 0))

    in_specs = [
        tiled((TB, in_size)),
        resident(params["w1"].shape), resident(params["b1"].shape),
        resident(params["w2"].shape), resident(params["b2"].shape),
        resident(params["w3"].shape), resident(params["b3"].shape),
        resident(wo_p.shape), resident(bo_p.shape),
    ]
    out_specs = pl.BlockSpec((TB, LANE), lambda i: (i, 0))

    flops = 2 * Bp * (in_size * h1 + h1 * h2 + h2 * h3 + h3 * LANE)
    bytes_accessed = (
        Bp * in_size * 4 + Bp * LANE * 4
        + sum(int(a.size) * 4 for a in args[1:])
    )
    cost = pl.CostEstimate(flops=flops, transcendentals=0,
                           bytes_accessed=bytes_accessed)

    q_padded = pl.pallas_call(
        dqn_kernel,
        out_shape=jax.ShapeDtypeStruct((Bp, LANE), jnp.float32),
        grid=(Bp // TB,),
        in_specs=in_specs,
        out_specs=out_specs,
        compiler_params=pltpu.CompilerParams(
            dimension_semantics=("parallel",)),
        cost_estimate=cost,
    )(*args)

    return q_padded[:B, :out_size]


def init_params(key, input_size, hidden_size, output_size,
                dtype=jnp.float32):
    """Deterministic synthetic init mimicking nn.Linear shapes.

    PyTorch Linear has W of shape (out, in); we store the transpose (in, out)
    so each layer is y = x @ W + b. Biases are (1, out) for broadcast.
    (dtype=jnp.bfloat16 is a valid knob on v6e/v7x to halve weight bytes.)
    """
    dims = [(input_size, hidden_size),
            (hidden_size, hidden_size * 2),
            (hidden_size * 2, hidden_size),
            (hidden_size, output_size)]
    names = ["1", "2", "3", "o"]
    params = {}
    for name, (fan_in, fan_out) in zip(names, dims):
        key, kw, kb = jax.random.split(key, 3)
        bound = 1.0 / jnp.sqrt(fan_in)
        params[f"w{name}"] = jax.random.uniform(
            kw, (fan_in, fan_out), jnp.float32, -bound, bound).astype(dtype)
        params[f"b{name}"] = jax.random.uniform(
            kb, (1, fan_out), jnp.float32, -bound, bound).astype(dtype)
    return params


def dqn_reference(x, params):
    h = jnp.maximum(x @ params["w1"] + params["b1"], 0.0)
    h = jnp.maximum(h @ params["w2"] + params["b2"], 0.0)
    h = jnp.maximum(h @ params["w3"] + params["b3"], 0.0)
    return h @ params["wo"] + params["bo"]


if __name__ == "__main__":
    key = jax.random.PRNGKey(0)
    # Maze DQN: small state vector -> 4 actions.
    B, input_size, hidden_size, output_size = 8, 4, 32, 4
    kx, kp = jax.random.split(key)
    x = jax.random.normal(kx, (B, input_size), jnp.float32)
    params = init_params(kp, input_size, hidden_size, output_size)

    q = dqn_forward(x, params)
    jax.block_until_ready(q)

    q_ref = dqn_reference(x, params)
    assert q.shape == (B, output_size)
    assert jnp.allclose(q, q_ref, atol=1e-5, rtol=1e-5)

    # Also exercise the gridded path with a realistic replay-buffer minibatch
    # (multiple batch tiles, padded batch).
    kx2, _ = jax.random.split(kx)
    xb = jax.random.normal(kx2, (1000, input_size), jnp.float32)
    qb = dqn_forward(xb, params)
    jax.block_until_ready(qb)
    assert qb.shape == (1000, output_size)
    assert jnp.allclose(qb, dqn_reference(xb, params), atol=1e-4, rtol=1e-4)

    print("KERNEL_OK")
</pallas_src>

<mosaic_0001>
module attributes {stable_mosaic.version = 11 : i64} {
  func.func @dqn_kernel(%arg0: i32, %arg1: memref<8x4xf32, #tpu.memory_space<vmem>>, %arg2: memref<4x32xf32, #tpu.memory_space<vmem>>, %arg3: memref<1x32xf32, #tpu.memory_space<vmem>>, %arg4: memref<32x64xf32, #tpu.memory_space<vmem>>, %arg5: memref<1x64xf32, #tpu.memory_space<vmem>>, %arg6: memref<64x32xf32, #tpu.memory_space<vmem>>, %arg7: memref<1x32xf32, #tpu.memory_space<vmem>>, %arg8: memref<32x128xf32, #tpu.memory_space<vmem>>, %arg9: memref<1x128xf32, #tpu.memory_space<vmem>>, %arg10: memref<8x128xf32, #tpu.memory_space<vmem>>) attributes {dimension_semantics = [#tpu.dimension_semantics<parallel>], iteration_bounds = array<i64: 1>, scalar_prefetch = 0 : i64, scratch_operands = 0 : i64, tpu.core_type = #tpu.core_type<tc>, window_params = [{transform_indices = @transform_0, window_bounds = array<i64: 8, 4>}, {pipeline_mode = #tpu.pipeline_mode<synchronous>, transform_indices = @transform_1, window_bounds = array<i64: 4, 32>}, {pipeline_mode = #tpu.pipeline_mode<synchronous>, transform_indices = @transform_2, window_bounds = array<i64: 1, 32>}, {pipeline_mode = #tpu.pipeline_mode<synchronous>, transform_indices = @transform_3, window_bounds = array<i64: 32, 64>}, {pipeline_mode = #tpu.pipeline_mode<synchronous>, transform_indices = @transform_4, window_bounds = array<i64: 1, 64>}, {pipeline_mode = #tpu.pipeline_mode<synchronous>, transform_indices = @transform_5, window_bounds = array<i64: 64, 32>}, {pipeline_mode = #tpu.pipeline_mode<synchronous>, transform_indices = @transform_6, window_bounds = array<i64: 1, 32>}, {pipeline_mode = #tpu.pipeline_mode<synchronous>, transform_indices = @transform_7, window_bounds = array<i64: 32, 128>}, {pipeline_mode = #tpu.pipeline_mode<synchronous>, transform_indices = @transform_8, window_bounds = array<i64: 1, 128>}, {transform_indices = @transform_9, window_bounds = array<i64: 8, 128>}]} {
    %c0 = arith.constant 0 : index
    %c0_0 = arith.constant 0 : index
    %0 = vector.load %arg1[%c0, %c0_0] : memref<8x4xf32, #tpu.memory_space<vmem>>, vector<8x4xf32>
    %c0_1 = arith.constant 0 : index
    %c0_2 = arith.constant 0 : index
    %1 = vector.load %arg2[%c0_1, %c0_2] : memref<4x32xf32, #tpu.memory_space<vmem>>, vector<4x32xf32>
    %cst = arith.constant dense<0.000000e+00> : vector<8x32xf32>
    %2 = tpu.matmul %0, %1, %cst {dimension_numbers = #tpu.dot_dimension_numbers<[1], [0], [0], [1], [0, 0, 1, 1], [], []>} : vector<8x4xf32>, vector<4x32xf32>, vector<8x32xf32> -> vector<8x32xf32>
    %c0_3 = arith.constant 0 : index
    %c0_4 = arith.constant 0 : index
    %3 = vector.load %arg3[%c0_3, %c0_4] : memref<1x32xf32, #tpu.memory_space<vmem>>, vector<1x32xf32>
    %4 = vector.broadcast %3 : vector<1x32xf32> to vector<8x32xf32>
    %5 = arith.addf %2, %4 : vector<8x32xf32>
    %cst_5 = arith.constant 0.000000e+00 : f32
    %6 = vector.broadcast %cst_5 : f32 to vector<8x32xf32>
    %7 = arith.maximumf %5, %6 : vector<8x32xf32>
    %c0_6 = arith.constant 0 : index
    %c0_7 = arith.constant 0 : index
    %8 = vector.load %arg4[%c0_6, %c0_7] : memref<32x64xf32, #tpu.memory_space<vmem>>, vector<32x64xf32>
    %cst_8 = arith.constant dense<0.000000e+00> : vector<8x64xf32>
    %9 = tpu.matmul %7, %8, %cst_8 {dimension_numbers = #tpu.dot_dimension_numbers<[1], [0], [0], [1], [0, 0, 1, 1], [], []>} : vector<8x32xf32>, vector<32x64xf32>, vector<8x64xf32> -> vector<8x64xf32>
    %c0_9 = arith.constant 0 : index
    %c0_10 = arith.constant 0 : index
    %10 = vector.load %arg5[%c0_9, %c0_10] : memref<1x64xf32, #tpu.memory_space<vmem>>, vector<1x64xf32>
    %11 = vector.broadcast %10 : vector<1x64xf32> to vector<8x64xf32>
    %12 = arith.addf %9, %11 : vector<8x64xf32>
    %cst_11 = arith.constant 0.000000e+00 : f32
    %13 = vector.broadcast %cst_11 : f32 to vector<8x64xf32>
    %14 = arith.maximumf %12, %13 : vector<8x64xf32>
    %c0_12 = arith.constant 0 : index
    %c0_13 = arith.constant 0 : index
    %15 = vector.load %arg6[%c0_12, %c0_13] : memref<64x32xf32, #tpu.memory_space<vmem>>, vector<64x32xf32>
    %cst_14 = arith.constant dense<0.000000e+00> : vector<8x32xf32>
    %16 = tpu.matmul %14, %15, %cst_14 {dimension_numbers = #tpu.dot_dimension_numbers<[1], [0], [0], [1], [0, 0, 1, 1], [], []>} : vector<8x64xf32>, vector<64x32xf32>, vector<8x32xf32> -> vector<8x32xf32>
    %c0_15 = arith.constant 0 : index
    %c0_16 = arith.constant 0 : index
    %17 = vector.load %arg7[%c0_15, %c0_16] : memref<1x32xf32, #tpu.memory_space<vmem>>, vector<1x32xf32>
    %18 = vector.broadcast %17 : vector<1x32xf32> to vector<8x32xf32>
    %19 = arith.addf %16, %18 : vector<8x32xf32>
    %cst_17 = arith.constant 0.000000e+00 : f32
    %20 = vector.broadcast %cst_17 : f32 to vector<8x32xf32>
    %21 = arith.maximumf %19, %20 : vector<8x32xf32>
    %c0_18 = arith.constant 0 : index
    %c0_19 = arith.constant 0 : index
    %22 = vector.load %arg8[%c0_18, %c0_19] : memref<32x128xf32, #tpu.memory_space<vmem>>, vector<32x128xf32>
    %cst_20 = arith.constant dense<0.000000e+00> : vector<8x128xf32>
    %23 = tpu.matmul %21, %22, %cst_20 {dimension_numbers = #tpu.dot_dimension_numbers<[1], [0], [0], [1], [0, 0, 1, 1], [], []>} : vector<8x32xf32>, vector<32x128xf32>, vector<8x128xf32> -> vector<8x128xf32>
    %c0_21 = arith.constant 0 : index
    %c0_22 = arith.constant 0 : index
    %24 = vector.load %arg9[%c0_21, %c0_22] : memref<1x128xf32, #tpu.memory_space<vmem>>, vector<1x128xf32>
    %25 = vector.broadcast %24 : vector<1x128xf32> to vector<8x128xf32>
    %26 = arith.addf %23, %25 : vector<8x128xf32>
    %c0_23 = arith.constant 0 : index
    %c0_24 = arith.constant 0 : index
    %27 = vector.load %arg10[%c0_23, %c0_24] : memref<8x128xf32, #tpu.memory_space<vmem>>, vector<8x128xf32>
    tpu.vector_store %arg10[%c0_23, %c0_24], %26 {strides = array<i32>} : memref<8x128xf32, #tpu.memory_space<vmem>>, vector<8x128xf32>,
    return
  }
  func.func @transform_0(%arg0: i32) -> (i32, i32) {
    %c0_i32 = arith.constant 0 : i32
    %c0_i32_0 = arith.constant 0 : i32
    return %arg0, %c0_i32 : i32, i32
  }
  func.func @transform_1(%arg0: i32) -> (i32, i32) {
    %c0_i32 = arith.constant 0 : i32
    %c0_i32_0 = arith.constant 0 : i32
    %c0_i32_1 = arith.constant 0 : i32
    return %c0_i32, %c0_i32_0 : i32, i32
  }
  func.func @transform_2(%arg0: i32) -> (i32, i32) {
    %c0_i32 = arith.constant 0 : i32
    %c0_i32_0 = arith.constant 0 : i32
    %c0_i32_1 = arith.constant 0 : i32
    return %c0_i32, %c0_i32_0 : i32, i32
  }
  func.func @transform_3(%arg0: i32) -> (i32, i32) {
    %c0_i32 = arith.constant 0 : i32
    %c0_i32_0 = arith.constant 0 : i32
    %c0_i32_1 = arith.constant 0 : i32
    return %c0_i32, %c0_i32_0 : i32, i32
  }
  func.func @transform_4(%arg0: i32) -> (i32, i32) {
    %c0_i32 = arith.constant 0 : i32
    %c0_i32_0 = arith.constant 0 : i32
    %c0_i32_1 = arith.constant 0 : i32
    return %c0_i32, %c0_i32_0 : i32, i32
  }
  func.func @transform_5(%arg0: i32) -> (i32, i32) {
    %c0_i32 = arith.constant 0 : i32
    %c0_i32_0 = arith.constant 0 : i32
    %c0_i32_1 = arith.constant 0 : i32
    return %c0_i32, %c0_i32_0 : i32, i32
  }
  func.func @transform_6(%arg0: i32) -> (i32, i32) {
    %c0_i32 = arith.constant 0 : i32
    %c0_i32_0 = arith.constant 0 : i32
    %c0_i32_1 = arith.constant 0 : i32
    return %c0_i32, %c0_i32_0 : i32, i32
  }
  func.func @transform_7(%arg0: i32) -> (i32, i32) {
    %c0_i32 = arith.constant 0 : i32
    %c0_i32_0 = arith.constant 0 : i32
    %c0_i32_1 = arith.constant 0 : i32
    return %c0_i32, %c0_i32_0 : i32, i32
  }
  func.func @transform_8(%arg0: i32) -> (i32, i32) {
    %c0_i32 = arith.constant 0 : i32
    %c0_i32_0 = arith.constant 0 : i32
    %c0_i32_1 = arith.constant 0 : i32
    return %c0_i32, %c0_i32_0 : i32, i32
  }
  func.func @transform_9(%arg0: i32) -> (i32, i32) {
    %c0_i32 = arith.constant 0 : i32
    %c0_i32_0 = arith.constant 0 : i32
    return %arg0, %c0_i32 : i32, i32
  }
}

</mosaic_0001>

<llo_original>
// kernel: dqn_forward.1
$region0: #{dqn_forward.1}
  #allocation0 [shape = 'u32[]', space=smem, size = 0x4, offset = 0x4, fixed_abs, tag = 'smem constant byte address 0x4 - core index']
  #allocation1 [shape = 'u32[144,128]{1,0:T(1,128)}', space=vmem, size = 0x12000, scoped, tag = 'internal scratch']
  %s0 = inlined_call_operand.vmem [shape: f32[8,4], index: 0, kind: input, shape index: {}]
  %s1 = inlined_call_operand.vmem [shape: f32[4,32], index: 1, kind: input, shape index: {}]
  %s2 = inlined_call_operand.vmem [shape: f32[1,32], index: 2, kind: input, shape index: {}]
  %s3 = inlined_call_operand.vmem [shape: f32[32,64], index: 3, kind: input, shape index: {}]
  %s4 = inlined_call_operand.vmem [shape: f32[1,64], index: 4, kind: input, shape index: {}]
  %s5 = inlined_call_operand.vmem [shape: f32[64,32], index: 5, kind: input, shape index: {}]
  %s6 = inlined_call_operand.vmem [shape: f32[1,32], index: 6, kind: input, shape index: {}]
  %s7 = inlined_call_operand.vmem [shape: f32[32,128], index: 7, kind: input, shape index: {}]
  %s8 = inlined_call_operand.vmem [shape: f32[1,128], index: 8, kind: input, shape index: {}]
  %s9 = inlined_call_operand.vmem [shape: f32[8,128], index: 9, kind: output, shape index: {}]
  %s10 = sld [smem:[#allocation0]]
  $region46: #{dqn_forward.1} parent=0
    _
  %s12 = ssub.s32 1, %s10
  %s13 = scalar_select 0, %s12, %s10
  // Predicated region
  $region2: #{dqn_forward.1} parent=0 // pred_check
    _
  $region3: #{dqn_forward.1} parent=0 // pred_check_branch
    %15 = sbr.rel (0) target = $region5
  $region4: #{dqn_forward.1} parent=0 // pred_region
    _
  $region5: #{dqn_forward.1} parent=0 // pred_fallthru
    _
  // Predicated region
  $region6: #{dqn_forward.1} parent=0 // pred_check
    _
  $region7: #{dqn_forward.1} parent=0 // pred_check_branch
    %17 = sbr.rel (0) target = $region9
  $region8: #{dqn_forward.1} parent=0 // pred_region
    _
  $region9: #{dqn_forward.1} parent=0 // pred_fallthru
    _
  // Predicated region
  $region10: #{dqn_forward.1} parent=0 // pred_check
    _
  $region11: #{dqn_forward.1} parent=0 // pred_check_branch
    %19 = sbr.rel (0) target = $region13
  $region12: #{dqn_forward.1} parent=0 // pred_region
    _
  $region13: #{dqn_forward.1} parent=0 // pred_fallthru
    _
  // Predicated region
  $region14: #{dqn_forward.1} parent=0 // pred_check
    _
  $region15: #{dqn_forward.1} parent=0 // pred_check_branch
    %21 = sbr.rel (0) target = $region17
  $region16: #{dqn_forward.1} parent=0 // pred_region
    _
  $region17: #{dqn_forward.1} parent=0 // pred_fallthru
    _
  // Predicated region
  $region18: #{dqn_forward.1} parent=0 // pred_check
    _
  $region19: #{dqn_forward.1} parent=0 // pred_check_branch
    %23 = sbr.rel (0) target = $region21
  $region20: #{dqn_forward.1} parent=0 // pred_region
    _
  $region21: #{dqn_forward.1} parent=0 // pred_fallthru
    _
  // Predicated region
  $region22: #{dqn_forward.1} parent=0 // pred_check
    _
  $region23: #{dqn_forward.1} parent=0 // pred_check_branch
    %25 = sbr.rel (0) target = $region25
  $region24: #{dqn_forward.1} parent=0 // pred_region
    _
  $region25: #{dqn_forward.1} parent=0 // pred_fallthru
    _
  // Predicated region
  $region26: #{dqn_forward.1} parent=0 // pred_check
    _
  $region27: #{dqn_forward.1} parent=0 // pred_check_branch
    %27 = sbr.rel (0) target = $region29
  $region28: #{dqn_forward.1} parent=0 // pred_region
    _
  $region29: #{dqn_forward.1} parent=0 // pred_fallthru
    _
  // Predicated region
  $region30: #{dqn_forward.1} parent=0 // pred_check
    _
  $region31: #{dqn_forward.1} parent=0 // pred_check_branch
    %29 = sbr.rel (0) target = $region33
  $region32: #{dqn_forward.1} parent=0 // pred_region
    _
  $region33: #{dqn_forward.1} parent=0 // pred_fallthru
    _
  // Predicated region
  $region34: #{dqn_forward.1} parent=0 // pred_check
    _
  $region35: #{dqn_forward.1} parent=0 // pred_check_branch
    %31 = sbr.rel (0) target = $region37
  $region36: #{dqn_forward.1} parent=0 // pred_region
    _
  $region37: #{dqn_forward.1} parent=0 // pred_fallthru
    _
  %v32 = vld [vmem:[%s0] sm:$0xff]
  %v33 = vld [vmem:[%s1] sm:$0xf]
  %v34 = vld [vmem:[%s2] sm:$0x1]
  %v36 = vlaneseq
  %v37 = vshrl.u32 %v36, 7
  %v38 = vsub.s32 0, %v37
  %v39 = vrot.slane %v34, %v38
  %vm41 = vcmask 31744
  %v43 = vsel %vm41, %v32, 0
  %vm45 = vcmask 1043456
  %v47 = vsel %vm45, %v33, 0
  %49 = vmatprep.subr.mxu0 0.0
  %50 = vmatpush1.msra.mxu0 %v47
  %51 = vmatprep.subr.mxu0 0.0
  %52 = vmatpush1.msra.mxu0 0.0
  %53 = vmatprep.subr.mxu0 0.0
  %54 = vmatpush1.msra.mxu0 0.0
  %55 = vmatprep.subr.mxu0 0.0
  %56 = vmatpush1.msra.mxu0 0.0
  %57 = vmatprep.subr.mxu0 0.0
  %58 = vmatpush1.msra.mxu0 0.0
  %59 = vmatprep.subr.mxu0 0.0
  %60 = vmatpush1.msra.mxu0 0.0
  %61 = vmatprep.subr.mxu0 0.0
  %62 = vmatpush1.msra.mxu0 0.0
  %63 = vmatprep.subr.mxu0 0.0
  %64 = vmatpush1.msra.mxu0 0.0
  %65 = vmatprep.subr.mxu0 0.0
  %66 = vmatpush1.msra.mxu0 0.0
  %67 = vmatprep.subr.mxu0 0.0
  %68 = vmatpush1.msra.mxu0 0.0
  %69 = vmatprep.subr.mxu0 0.0
  %70 = vmatpush1.msra.mxu0 0.0
  %71 = vmatprep.subr.mxu0 0.0
  %72 = vmatpush1.msra.mxu0 0.0
  %73 = vmatprep.subr.mxu0 0.0
  %74 = vmatpush1.msra.mxu0 0.0
  %75 = vmatprep.subr.mxu0 0.0
  %76 = vmatpush1.msra.mxu0 0.0
  %77 = vmatprep.subr.mxu0 0.0
  %78 = vmatpush1.msra.mxu0 0.0
  %79 = vmatprep.subr.mxu0 0.0
  %80 = vmatpush1.msra.mxu0 0.0
  %81 = vmatprep.subr.mxu0 0.0
  %82 = vmatpush1.msra.mxu0 0.0
  %83 = vmatprep.subr.mxu0 0.0
  %84 = vmatpush1.msra.mxu0 0.0
  %85 = vmatprep.subr.mxu0 0.0
  %86 = vmatpush1.msra.mxu0 0.0
  %87 = vmatprep.subr.mxu0 0.0
  %88 = vmatpush1.msra.mxu0 0.0
  %89 = vmatprep.subr.mxu0 0.0
  %90 = vmatpush1.msra.mxu0 0.0
  %91 = vmatprep.subr.mxu0 0.0
  %92 = vmatpush1.msra.mxu0 0.0
  %93 = vmatprep.subr.mxu0 0.0
  %94 = vmatpush1.msra.mxu0 0.0
  %95 = vmatprep.subr.mxu0 0.0
  %96 = vmatpush1.msra.mxu0 0.0
  %97 = vmatprep.subr.mxu0 0.0
  %98 = vmatpush1.msra.mxu0 0.0
  %99 = vmatprep.subr.mxu0 0.0
  %100 = vmatpush1.msra.mxu0 0.0
  %101 = vmatprep.subr.mxu0 0.0
  %102 = vmatpush1.msra.mxu0 0.0
  %103 = vmatprep.subr.mxu0 0.0
  %104 = vmatpush1.msra.mxu0 0.0
  %105 = vmatprep.subr.mxu0 0.0
  %106 = vmatpush1.msra.mxu0 0.0
  %107 = vmatprep.subr.mxu0 0.0
  %108 = vmatpush1.msra.mxu0 0.0
  %109 = vmatprep.subr.mxu0 0.0
  %110 = vmatpush1.msra.mxu0 0.0
  %111 = vmatprep.subr.mxu0 0.0
  %112 = vmatpush1.msra.mxu0 0.0
  %113 = vmatprep.mubr.f32.mxu0 0.0
  %114 = vmatmul.mubr.f32.gmra.mrb[0].mxu0 %v43
  %v115 = vpop.f32.mrb[0].mxu0
  %v116 = vadd.f32 %v39, %v115
  %v117 = vpop.f32.mrb[0].mxu0
  %118 = vdwg.mxu0
  %v119 = vmax.f32 %v116, 0.0
  %v120 = vld [vmem:[%s3] sm:$0xff]
  %v121 = vld [vmem:[%s3 + $0x8] sm:$0xff]
  %v122 = vld [vmem:[%s3 + $0x10] sm:$0xff]
  %v123 = vld [vmem:[%s3 + $0x18] sm:$0xff]
  %v124 = vld [vmem:[%s4] sm:$0x1]
  %v126 = vlaneseq
  %v127 = vshrl.u32 %v126, 7
  %v128 = vsub.s32 0, %v127
  %v129 = vrot.slane %v124, %v128
  %vm131 = vcmask 261120
  %v133 = vsel %vm131, %v119, 0
  %135 = vmatprep.subr.mxu0 0.0
  %136 = vmatpush1.msra.mxu0 %v120
  %137 = vmatprep.subr.mxu0 0.0
  %138 = vmatpush1.msra.mxu0 %v121
  %139 = vmatprep.subr.mxu0 0.0
  %140 = vmatpush1.msra.mxu0 %v122
  %141 = vmatprep.subr.mxu0 0.0
  %142 = vmatpush1.msra.mxu0 %v123
  %143 = vmatprep.subr.mxu0 0.0
  %144 = vmatpush1.msra.mxu0 0.0
  %145 = vmatprep.subr.mxu0 0.0
  %146 = vmatpush1.msra.mxu0 0.0
  %147 = vmatprep.subr.mxu0 0.0
  %148 = vmatpush1.msra.mxu0 0.0
  %149 = vmatprep.subr.mxu0 0.0
  %150 = vmatpush1.msra.mxu0 0.0
  %151 = vmatprep.subr.mxu0 0.0
  %152 = vmatpush1.msra.mxu0 0.0
  %153 = vmatprep.subr.mxu0 0.0
  %154 = vmatpush1.msra.mxu0 0.0
  %155 = vmatprep.subr.mxu0 0.0
  %156 = vmatpush1.msra.mxu0 0.0
  %157 = vmatprep.subr.mxu0 0.0
  %158 = vmatpush1.msra.mxu0 0.0
  %159 = vmatprep.subr.mxu0 0.0
  %160 = vmatpush1.msra.mxu0 0.0
  %161 = vmatprep.subr.mxu0 0.0
  %162 = vmatpush1.msra.mxu0 0.0
  %163 = vmatprep.subr.mxu0 0.0
  %164 = vmatpush1.msra.mxu0 0.0
  %165 = vmatprep.subr.mxu0 0.0
  %166 = vmatpush1.msra.mxu0 0.0
  %167 = vmatprep.subr.mxu0 0.0
  %168 = vmatpush1.msra.mxu0 0.0
  %169 = vmatprep.subr.mxu0 0.0
  %170 = vmatpush1.msra.mxu0 0.0
  %171 = vmatprep.subr.mxu0 0.0
  %172 = vmatpush1.msra.mxu0 0.0
  %173 = vmatprep.subr.mxu0 0.0
  %174 = vmatpush1.msra.mxu0 0.0
  %175 = vmatprep.subr.mxu0 0.0
  %176 = vmatpush1.msra.mxu0 0.0
  %177 = vmatprep.subr.mxu0 0.0
  %178 = vmatpush1.msra.mxu0 0.0
  %179 = vmatprep.subr.mxu0 0.0
  %180 = vmatpush1.msra.mxu0 0.0
  %181 = vmatprep.subr.mxu0 0.0
  %182 = vmatpush1.msra.mxu0 0.0
  %183 = vmatprep.subr.mxu0 0.0
  %184 = vmatpush1.msra.mxu0 0.0
  %185 = vmatprep.subr.mxu0 0.0
  %186 = vmatpush1.msra.mxu0 0.0
  %187 = vmatprep.subr.mxu0 0.0
  %188 = vmatpush1.msra.mxu0 0.0
  %189 = vmatprep.subr.mxu0 0.0
  %190 = vmatpush1.msra.mxu0 0.0
  %191 = vmatprep.subr.mxu0 0.0
  %192 = vmatpush1.msra.mxu0 0.0
  %193 = vmatprep.subr.mxu0 0.0
  %194 = vmatpush1.msra.mxu0 0.0
  %195 = vmatprep.subr.mxu0 0.0
  %196 = vmatpush1.msra.mxu0 0.0
  %197 = vmatprep.subr.mxu0 0.0
  %198 = vmatpush1.msra.mxu0 0.0
  %199 = vmatprep.mubr.f32.mxu0 0.0
  %200 = vmatmul.mubr.f32.gmra.mrb[0].mxu0 %v133
  %v201 = vpop.f32.mrb[0].mxu0
  %v202 = vadd.f32 %v129, %v201
  %v203 = vpop.f32.mrb[0].mxu0
  %204 = vdwg.mxu0
  %v205 = vmax.f32 %v202, 0.0
  %v206 = vld [vmem:[%s5] sm:$0xff]
  %v207 = vld [vmem:[%s5 + $0x8] sm:$0xff]
  %v208 = vld [vmem:[%s5 + $0x10] sm:$0xff]
  %v209 = vld [vmem:[%s5 + $0x18] sm:$0xff]
  %v210 = vld [vmem:[%s5 + $0x20] sm:$0xff]
  %v211 = vld [vmem:[%s5 + $0x28] sm:$0xff]
  %v212 = vld [vmem:[%s5 + $0x30] sm:$0xff]
  %v213 = vld [vmem:[%s5 + $0x38] sm:$0xff]
  %v214 = vld [vmem:[%s6] sm:$0x1]
  %v216 = vlaneseq
  %v217 = vshrl.u32 %v216, 7
  %v218 = vsub.s32 0, %v217
  %v219 = vrot.slane %v214, %v218
  %vm221 = vcmask 523264
  %v223 = vsel %vm221, %v205, 0
  %225 = vmatprep.subr.mxu0 0.0
  %226 = vmatpush1.msra.mxu0 %v206
  %227 = vmatprep.subr.mxu0 0.0
  %228 = vmatpush1.msra.mxu0 %v207
  %229 = vmatprep.subr.mxu0 0.0
  %230 = vmatpush1.msra.mxu0 %v208
  %231 = vmatprep.subr.mxu0 0.0
  %232 = vmatpush1.msra.mxu0 %v209
  %233 = vmatprep.subr.mxu0 0.0
  %234 = vmatpush1.msra.mxu0 %v210
  %235 = vmatprep.subr.mxu0 0.0
  %236 = vmatpush1.msra.mxu0 %v211
  %237 = vmatprep.subr.mxu0 0.0
  %238 = vmatpush1.msra.mxu0 %v212
  %239 = vmatprep.subr.mxu0 0.0
  %240 = vmatpush1.msra.mxu0 %v213
  %241 = vmatprep.subr.mxu0 0.0
  %242 = vmatpush1.msra.mxu0 0.0
  %243 = vmatprep.subr.mxu0 0.0
  %244 = vmatpush1.msra.mxu0 0.0
  %245 = vmatprep.subr.mxu0 0.0
  %246 = vmatpush1.msra.mxu0 0.0
  %247 = vmatprep.subr.mxu0 0.0
  %248 = vmatpush1.msra.mxu0 0.0
  %249 = vmatprep.subr.mxu0 0.0
  %250 = vmatpush1.msra.mxu0 0.0
  %251 = vmatprep.subr.mxu0 0.0
  %252 = vmatpush1.msra.mxu0 0.0
  %253 = vmatprep.subr.mxu0 0.0
  %254 = vmatpush1.msra.mxu0 0.0
  %255 = vmatprep.subr.mxu0 0.0
  %256 = vmatpush1.msra.mxu0 0.0
  %257 = vmatprep.subr.mxu0 0.0
  %258 = vmatpush1.msra.mxu0 0.0
  %259 = vmatprep.subr.mxu0 0.0
  %260 = vmatpush1.msra.mxu0 0.0
  %261 = vmatprep.subr.mxu0 0.0
  %262 = vmatpush1.msra.mxu0 0.0
  %263 = vmatprep.subr.mxu0 0.0
  %264 = vmatpush1.msra.mxu0 0.0
  %265 = vmatprep.subr.mxu0 0.0
  %266 = vmatpush1.msra.mxu0 0.0
  %267 = vmatprep.subr.mxu0 0.0
  %268 = vmatpush1.msra.mxu0 0.0
  %269 = vmatprep.subr.mxu0 0.0
  %270 = vmatpush1.msra.mxu0 0.0
  %271 = vmatprep.subr.mxu0 0.0
  %272 = vmatpush1.msra.mxu0 0.0
  %273 = vmatprep.subr.mxu0 0.0
  %274 = vmatpush1.msra.mxu0 0.0
  %275 = vmatprep.subr.mxu0 0.0
  %276 = vmatpush1.msra.mxu0 0.0
  %277 = vmatprep.subr.mxu0 0.0
  %278 = vmatpush1.msra.mxu0 0.0
  %279 = vmatprep.subr.mxu0 0.0
  %280 = vmatpush1.msra.mxu0 0.0
  %281 = vmatprep.subr.mxu0 0.0
  %282 = vmatpush1.msra.mxu0 0.0
  %283 = vmatprep.subr.mxu0 0.0
  %284 = vmatpush1.msra.mxu0 0.0
  %285 = vmatprep.subr.mxu0 0.0
  %286 = vmatpush1.msra.mxu0 0.0
  %287 = vmatprep.subr.mxu0 0.0
  %288 = vmatpush1.msra.mxu0 0.0
  %289 = vmatprep.mubr.f32.mxu0 0.0
  %290 = vmatmul.mubr.f32.gmra.mrb[0].mxu0 %v223
  %v291 = vpop.f32.mrb[0].mxu0
  %v292 = vadd.f32 %v219, %v291
  %v293 = vpop.f32.mrb[0].mxu0
  %294 = vdwg.mxu0
  %v295 = vmax.f32 %v292, 0.0
  %v296 = vld [vmem:[%s7] sm:$0xff]
  %v297 = vld [vmem:[%s7 + $0x8] sm:$0xff]
  %v298 = vld [vmem:[%s7 + $0x10] sm:$0xff]
  %v299 = vld [vmem:[%s7 + $0x18] sm:$0xff]
  %v300 = vld [vmem:[%s8] sm:$0x1]
  %v302 = vlaneseq
  %v303 = vshrl.u32 %v302, 7
  %v304 = vsub.s32 0, %v303
  %v305 = vrot.slane %v300, %v304
  %v308 = vsel %vm131, %v295, 0
  %310 = vmatprep.subr.mxu0 0.0
  %311 = vmatpush1.msra.mxu0 %v296
  %312 = vmatprep.subr.mxu0 0.0
  %313 = vmatpush1.msra.mxu0 %v297
  %314 = vmatprep.subr.mxu0 0.0
  %315 = vmatpush1.msra.mxu0 %v298
  %316 = vmatprep.subr.mxu0 0.0
  %317 = vmatpush1.msra.mxu0 %v299
  %318 = vmatprep.subr.mxu0 0.0
  %319 = vmatpush1.msra.mxu0 0.0
  %320 = vmatprep.subr.mxu0 0.0
  %321 = vmatpush1.msra.mxu0 0.0
  %322 = vmatprep.subr.mxu0 0.0
  %323 = vmatpush1.msra.mxu0 0.0
  %324 = vmatprep.subr.mxu0 0.0
  %325 = vmatpush1.msra.mxu0 0.0
  %326 = vmatprep.subr.mxu0 0.0
  %327 = vmatpush1.msra.mxu0 0.0
  %328 = vmatprep.subr.mxu0 0.0
  %329 = vmatpush1.msra.mxu0 0.0
  %330 = vmatprep.subr.mxu0 0.0
  %331 = vmatpush1.msra.mxu0 0.0
  %332 = vmatprep.subr.mxu0 0.0
  %333 = vmatpush1.msra.mxu0 0.0
  %334 = vmatprep.subr.mxu0 0.0
  %335 = vmatpush1.msra.mxu0 0.0
  %336 = vmatprep.subr.mxu0 0.0
  %337 = vmatpush1.msra.mxu0 0.0
  %338 = vmatprep.subr.mxu0 0.0
  %339 = vmatpush1.msra.mxu0 0.0
  %340 = vmatprep.subr.mxu0 0.0
  %341 = vmatpush1.msra.mxu0 0.0
  %342 = vmatprep.subr.mxu0 0.0
  %343 = vmatpush1.msra.mxu0 0.0
  %344 = vmatprep.subr.mxu0 0.0
  %345 = vmatpush1.msra.mxu0 0.0
  %346 = vmatprep.subr.mxu0 0.0
  %347 = vmatpush1.msra.mxu0 0.0
  %348 = vmatprep.subr.mxu0 0.0
  %349 = vmatpush1.msra.mxu0 0.0
  %350 = vmatprep.subr.mxu0 0.0
  %351 = vmatpush1.msra.mxu0 0.0
  %352 = vmatprep.subr.mxu0 0.0
  %353 = vmatpush1.msra.mxu0 0.0
  %354 = vmatprep.subr.mxu0 0.0
  %355 = vmatpush1.msra.mxu0 0.0
  %356 = vmatprep.subr.mxu0 0.0
  %357 = vmatpush1.msra.mxu0 0.0
  %358 = vmatprep.subr.mxu0 0.0
  %359 = vmatpush1.msra.mxu0 0.0
  %360 = vmatprep.subr.mxu0 0.0
  %361 = vmatpush1.msra.mxu0 0.0
  %362 = vmatprep.subr.mxu0 0.0
  %363 = vmatpush1.msra.mxu0 0.0
  %364 = vmatprep.subr.mxu0 0.0
  %365 = vmatpush1.msra.mxu0 0.0
  %366 = vmatprep.subr.mxu0 0.0
  %367 = vmatpush1.msra.mxu0 0.0
  %368 = vmatprep.subr.mxu0 0.0
  %369 = vmatpush1.msra.mxu0 0.0
  %370 = vmatprep.subr.mxu0 0.0
  %371 = vmatpush1.msra.mxu0 0.0
  %372 = vmatprep.subr.mxu0 0.0
  %373 = vmatpush1.msra.mxu0 0.0
  %374 = vmatprep.mubr.f32.mxu0 0.0
  %375 = vmatmul.mubr.f32.gmra.mrb[0].mxu0 %v308
  %v376 = vpop.f32.mrb[0].mxu0
  %v377 = vadd.f32 %v305, %v376
  %v378 = vpop.f32.mrb[0].mxu0
  %379 = vdwg.mxu0
  %380 = vst [vmem:[%s9] sm:$0xff] %v377
  // Predicated region
  $region38: #{dqn_forward.1} parent=0 // pred_check
    _
  $region39: #{dqn_forward.1} parent=0 // pred_check_branch
    %382 = sbr.rel (0) target = $region41
  $region40: #{dqn_forward.1} parent=0 // pred_region
    _
  $region41: #{dqn_forward.1} parent=0 // pred_fallthru
    _
  // Predicated region
  $region42: #{dqn_forward.1} parent=0 // pred_check
    _
  $region43: #{dqn_forward.1} parent=0 // pred_check_branch
    %384 = sbr.rel (0) target = $region45
  $region44: #{dqn_forward.1} parent=0 // pred_region
    _
  $region45: #{dqn_forward.1} parent=0 // pred_fallthru
    _

</llo_original>
